<compile_context>
chip_gen: v7x
topology: tpu7x:2x2x1
jax: 0.10.0
libtpu: 0.0.40
codegen_flags: <defaults>
</compile_context>

<pallas_src>
import math

import numpy as np
import jax
import jax.numpy as jnp
from jax.experimental import pallas as pl
from jax.experimental.pallas import tpu as pltpu


def _round_up(n: int, m: int) -> int:
    return ((n + m - 1) // m) * m


def _make_freqs(dim: int) -> np.ndarray:
    """exp(arange(half_dim) * -log(10000)/(half_dim-1)), float32 (trace-time)."""
    half_dim = dim // 2
    scale = math.log(10000.0) / (half_dim - 1)
    return np.exp(np.arange(half_dim, dtype=np.float32) * np.float32(-scale)).astype(
        np.float32
    )


def _sin_pos_emb_kernel(x_ref, sel_ref, freq_ref, phase_ref, o_ref):
    """One batch tile.

    x_ref:     (TB, nb_mod)         f32
    sel_ref:   (nb_mod, nb_mod*dim) f32  0/1 selection matrix
    freq_ref:  (1, nb_mod*dim)      f32  [freqs, freqs] tiled per modality
    phase_ref: (1, nb_mod*dim)      f32  0 for sin half, pi/2 for cos half
    o_ref:     (TB, nb_mod*dim)
    """
    # Single MXU matmul: xg[:, m*dim + j] == x[:, m]  (exact: 0/1 weights).
    xg = jnp.dot(x_ref[...], sel_ref[...], preferred_element_type=jnp.float32)
    # arg = x * freq (+ pi/2 in the cos half); cos(a) == sin(a + pi/2), so one
    # lane-dense sin over the full-width tile produces the whole output block.
    arg = xg * freq_ref[...] + phase_ref[...]
    o_ref[...] = jnp.sin(arg).astype(o_ref.dtype)


def sinusoidal_pos_emb_multimodal(
    x: jax.Array,
    dim: int,
    nb_mod: int,
    *,
    block_b: int = 512,
    out_dtype=jnp.float32,  # pass jnp.bfloat16 to halve HBM writeback if allowed
) -> jax.Array:
    """Pallas wrapper. x: (B, nb_mod) -> (B, nb_mod*dim)."""
    assert dim % 2 == 0 and dim >= 4, "dim must be even and >= 4"
    assert x.ndim == 2 and x.shape[1] == nb_mod
    B = x.shape[0]
    x = x.astype(jnp.float32)

    half_dim = dim // 2
    W = nb_mod * dim

    # Trace-time (numpy) constants — nothing is recomputed per grid step.
    freqs = _make_freqs(dim)  # (half_dim,)
    freq_full = np.tile(np.concatenate([freqs, freqs]), nb_mod).reshape(1, W)
    phase = (
        np.tile(
            np.concatenate(
                [np.zeros(half_dim, np.float32),
                 np.full(half_dim, np.pi / 2, np.float32)]
            ),
            nb_mod,
        )
        .reshape(1, W)
        .astype(np.float32)
    )
    sel = np.zeros((nb_mod, W), np.float32)
    for m in range(nb_mod):
        sel[m, m * dim : (m + 1) * dim] = 1.0

    # Batch tile: multiple of 8 (f32 sublane); cap so the f32 output tile stays
    # around <= 2 MiB (x2 for double buffering) regardless of nb_mod*dim.
    vmem_cap_rows = max(8, ((2 * 1024 * 1024) // (4 * W)) // 8 * 8)
    TB = min(block_b, max(8, _round_up(B, 8)), vmem_cap_rows)
    TB = max(8, _round_up(TB, 8))
    grid = (pl.cdiv(B, TB),)  # boundary blocks handled by Pallas (no pad/slice)

    out = pl.pallas_call(
        _sin_pos_emb_kernel,
        out_shape=jax.ShapeDtypeStruct((B, W), out_dtype),
        grid=grid,
        in_specs=[
            pl.BlockSpec((TB, nb_mod), lambda i: (i, 0)),
            pl.BlockSpec((nb_mod, W), lambda i: (0, 0)),
            pl.BlockSpec((1, W), lambda i: (0, 0)),
            pl.BlockSpec((1, W), lambda i: (0, 0)),
        ],
        out_specs=pl.BlockSpec((TB, W), lambda i: (i, 0)),
        compiler_params=pltpu.CompilerParams(
            dimension_semantics=("parallel",),
        ),
    )(x, jnp.asarray(sel), jnp.asarray(freq_full), jnp.asarray(phase))

    return out


def _reference(x: jax.Array, dim: int, nb_mod: int) -> jax.Array:
    """Pure-JAX reference mirroring the PyTorch forward (uses cos explicitly)."""
    freqs = jnp.asarray(_make_freqs(dim))
    outs = []
    for i in range(nb_mod):
        e = x[:, i][:, None].astype(jnp.float32) * freqs[None, :]
        outs.append(jnp.concatenate([jnp.sin(e), jnp.cos(e)], axis=-1))
    return jnp.concatenate(outs, axis=-1)


def _check(x, dim, nb_mod, **kw):
    out = jax.block_until_ready(sinusoidal_pos_emb_multimodal(x, dim, nb_mod, **kw))
    ref = _reference(x, dim, nb_mod)
    assert out.shape == (x.shape[0], nb_mod * dim), out.shape
    err = float(jnp.max(jnp.abs(out - ref)))
    # f32 trig of O(100) args: allow a few e-5 of argument-reduction /
    # sin(a+pi/2) implementation difference vs XLA's sin/cos.
    assert err < 2e-4, err
    return err


if __name__ == "__main__":
    # Case 1: tiny batch, single grid step (dim=32, nb_mod=4 -> W=128 lane-dense).
    dim, nb_mod = 32, 4
    x = jax.random.uniform(
        jax.random.PRNGKey(0), (8, nb_mod), jnp.float32, minval=0.0, maxval=100.0
    )
    _check(x, dim, nb_mod)

    # Case 2: batch not a multiple of the block -> exercises boundary blocks.
    x2 = jax.random.uniform(
        jax.random.PRNGKey(1), (300, nb_mod), jnp.float32, minval=0.0, maxval=100.0
    )
    _check(x2, dim, nb_mod, block_b=64)

    # Case 3: output width not a multiple of 128 (full-dim lane block).
    x3 = jax.random.uniform(
        jax.random.PRNGKey(2), (40, 3), jnp.float32, minval=0.0, maxval=100.0
    )
    _check(x3, 32, 3)

    print("KERNEL_OK")
</pallas_src>

<mosaic_0001>
module attributes {stable_mosaic.version = 11 : i64} {
  func.func @_sin_pos_emb_kernel(%arg0: i32, %arg1: memref<8x4xf32, #tpu.memory_space<vmem>>, %arg2: memref<4x128xf32, #tpu.memory_space<vmem>>, %arg3: memref<1x128xf32, #tpu.memory_space<vmem>>, %arg4: memref<1x128xf32, #tpu.memory_space<vmem>>, %arg5: memref<8x128xf32, #tpu.memory_space<vmem>>) attributes {dimension_semantics = [#tpu.dimension_semantics<parallel>], iteration_bounds = array<i64: 1>, scalar_prefetch = 0 : i64, scratch_operands = 0 : i64, tpu.core_type = #tpu.core_type<tc>, window_params = [{transform_indices = @transform_0, window_bounds = array<i64: 8, 4>}, {pipeline_mode = #tpu.pipeline_mode<synchronous>, transform_indices = @transform_1, window_bounds = array<i64: 4, 128>}, {pipeline_mode = #tpu.pipeline_mode<synchronous>, transform_indices = @transform_2, window_bounds = array<i64: 1, 128>}, {pipeline_mode = #tpu.pipeline_mode<synchronous>, transform_indices = @transform_3, window_bounds = array<i64: 1, 128>}, {transform_indices = @transform_4, window_bounds = array<i64: 8, 128>}]} {
    %c0 = arith.constant 0 : index
    %c0_0 = arith.constant 0 : index
    %0 = vector.load %arg1[%c0, %c0_0] : memref<8x4xf32, #tpu.memory_space<vmem>>, vector<8x4xf32>
    %c0_1 = arith.constant 0 : index
    %c0_2 = arith.constant 0 : index
    %1 = vector.load %arg2[%c0_1, %c0_2] : memref<4x128xf32, #tpu.memory_space<vmem>>, vector<4x128xf32>
    %cst = arith.constant dense<0.000000e+00> : vector<8x128xf32>
    %2 = tpu.matmul %0, %1, %cst {dimension_numbers = #tpu.dot_dimension_numbers<[1], [0], [0], [1], [0, 0, 1, 1], [], []>} : vector<8x4xf32>, vector<4x128xf32>, vector<8x128xf32> -> vector<8x128xf32>
    %c0_3 = arith.constant 0 : index
    %c0_4 = arith.constant 0 : index
    %3 = vector.load %arg3[%c0_3, %c0_4] : memref<1x128xf32, #tpu.memory_space<vmem>>, vector<1x128xf32>
    %4 = vector.broadcast %3 : vector<1x128xf32> to vector<8x128xf32>
    %5 = arith.mulf %2, %4 : vector<8x128xf32>
    %c0_5 = arith.constant 0 : index
    %c0_6 = arith.constant 0 : index
    %6 = vector.load %arg4[%c0_5, %c0_6] : memref<1x128xf32, #tpu.memory_space<vmem>>, vector<1x128xf32>
    %7 = vector.broadcast %6 : vector<1x128xf32> to vector<8x128xf32>
    %8 = arith.addf %5, %7 : vector<8x128xf32>
    %9 = math.sin %8 : vector<8x128xf32>
    %c0_7 = arith.constant 0 : index
    %c0_8 = arith.constant 0 : index
    %10 = vector.load %arg5[%c0_7, %c0_8] : memref<8x128xf32, #tpu.memory_space<vmem>>, vector<8x128xf32>
    tpu.vector_store %arg5[%c0_7, %c0_8], %9 {strides = array<i32>} : memref<8x128xf32, #tpu.memory_space<vmem>>, vector<8x128xf32>,
    return
  }
  func.func @transform_0(%arg0: i32) -> (i32, i32) {
    %c0_i32 = arith.constant 0 : i32
    %c0_i32_0 = arith.constant 0 : i32
    return %arg0, %c0_i32 : i32, i32
  }
  func.func @transform_1(%arg0: i32) -> (i32, i32) {
    %c0_i32 = arith.constant 0 : i32
    %c0_i32_0 = arith.constant 0 : i32
    %c0_i32_1 = arith.constant 0 : i32
    return %c0_i32, %c0_i32_0 : i32, i32
  }
  func.func @transform_2(%arg0: i32) -> (i32, i32) {
    %c0_i32 = arith.constant 0 : i32
    %c0_i32_0 = arith.constant 0 : i32
    %c0_i32_1 = arith.constant 0 : i32
    return %c0_i32, %c0_i32_0 : i32, i32
  }
  func.func @transform_3(%arg0: i32) -> (i32, i32) {
    %c0_i32 = arith.constant 0 : i32
    %c0_i32_0 = arith.constant 0 : i32
    %c0_i32_1 = arith.constant 0 : i32
    return %c0_i32, %c0_i32_0 : i32, i32
  }
  func.func @transform_4(%arg0: i32) -> (i32, i32) {
    %c0_i32 = arith.constant 0 : i32
    %c0_i32_0 = arith.constant 0 : i32
    return %arg0, %c0_i32 : i32, i32
  }
}

</mosaic_0001>

<llo_original>
// kernel: tpu_custom_call.1
$region0: #{tpu_custom_call.1}
  #allocation0 [shape = 'u32[]', space=smem, size = 0x4, offset = 0x4, fixed_abs, tag = 'smem constant byte address 0x4 - core index']
  #allocation1 [shape = 'u32[144,128]{1,0:T(1,128)}', space=vmem, size = 0x12000, scoped, tag = 'internal scratch']
  %s0 = inlined_call_operand.vmem [shape: f32[8,4], index: 0, kind: input, shape index: {}]
  %s1 = inlined_call_operand.vmem [shape: f32[4,128], index: 1, kind: input, shape index: {}]
  %s2 = inlined_call_operand.vmem [shape: f32[1,128], index: 2, kind: input, shape index: {}]
  %s3 = inlined_call_operand.vmem [shape: f32[1,128], index: 3, kind: input, shape index: {}]
  %s4 = inlined_call_operand.hbm [shape: f32[8,128], index: 4, kind: output, shape index: {}]
  %s5 = sld [smem:[#allocation0]]
  $region26: #{tpu_custom_call.1} parent=0
    _
  %s7 = ssub.s32 1, %s5
  %s8 = scalar_select 0, %s7, %s5
  $region1: #{tpu_custom_call.1} parent=0
    #allocation2 [shape = 'u8[4096]{0}', space=vmem, size = 0x1000, scoped, tag = 'output window, operand 0, single buffered']
    #allocation3 [shape = 's32[1]{0}', space=sflag, size = 0x4, scoped, tag = 'scoped memory for tpu_custom_call.1']
    %9 = vsyncpa [#allocation3], 0
    // Predicated region
    $region2: #{tpu_custom_call.1} parent=1 // pred_check
      _
    $region3: #{tpu_custom_call.1} parent=1 // pred_check_branch
      %11 = sbr.rel (0) target = $region5
    $region4: #{tpu_custom_call.1} parent=1 // pred_region
      _
    $region5: #{tpu_custom_call.1} parent=1 // pred_fallthru
      _
    // Predicated region
    $region6: #{tpu_custom_call.1} parent=1 // pred_check
      _
    $region7: #{tpu_custom_call.1} parent=1 // pred_check_branch
      %13 = sbr.rel (0) target = $region9
    $region8: #{tpu_custom_call.1} parent=1 // pred_region
      _
    $region9: #{tpu_custom_call.1} parent=1 // pred_fallthru
      _
    // Predicated region
    $region10: #{tpu_custom_call.1} parent=1 // pred_check
      _
    $region11: #{tpu_custom_call.1} parent=1 // pred_check_branch
      %15 = sbr.rel (0) target = $region13
    $region12: #{tpu_custom_call.1} parent=1 // pred_region
      _
    $region13: #{tpu_custom_call.1} parent=1 // pred_fallthru
      _
    // Predicated region
    $region14: #{tpu_custom_call.1} parent=1 // pred_check
      _
    $region15: #{tpu_custom_call.1} parent=1 // pred_check_branch
      %17 = sbr.rel (0) target = $region17
    $region16: #{tpu_custom_call.1} parent=1 // pred_region
      _
    $region17: #{tpu_custom_call.1} parent=1 // pred_fallthru
      _
    %v18 = vld [vmem:[%s0] sm:$0xff]
    %v19 = vld [vmem:[%s1] sm:$0xf]
    %vm20 = vcmask 31744
    %v22 = vsel %vm20, %v18, 0
    %vm24 = vcmask 1043456
    %v26 = vsel %vm24, %v19, 0
    %28 = vmatprep.subr.mxu0 0.0
    %29 = vmatpush1.msra.mxu0 %v26
    %30 = vmatprep.subr.mxu0 0.0
    %31 = vmatpush1.msra.mxu0 0.0
    %32 = vmatprep.subr.mxu0 0.0
    %33 = vmatpush1.msra.mxu0 0.0
    %34 = vmatprep.subr.mxu0 0.0
    %35 = vmatpush1.msra.mxu0 0.0
    %36 = vmatprep.subr.mxu0 0.0
    %37 = vmatpush1.msra.mxu0 0.0
    %38 = vmatprep.subr.mxu0 0.0
    %39 = vmatpush1.msra.mxu0 0.0
    %40 = vmatprep.subr.mxu0 0.0
    %41 = vmatpush1.msra.mxu0 0.0
    %42 = vmatprep.subr.mxu0 0.0
    %43 = vmatpush1.msra.mxu0 0.0
    %44 = vmatprep.subr.mxu0 0.0
    %45 = vmatpush1.msra.mxu0 0.0
    %46 = vmatprep.subr.mxu0 0.0
    %47 = vmatpush1.msra.mxu0 0.0
    %48 = vmatprep.subr.mxu0 0.0
    %49 = vmatpush1.msra.mxu0 0.0
    %50 = vmatprep.subr.mxu0 0.0
    %51 = vmatpush1.msra.mxu0 0.0
    %52 = vmatprep.subr.mxu0 0.0
    %53 = vmatpush1.msra.mxu0 0.0
    %54 = vmatprep.subr.mxu0 0.0
    %55 = vmatpush1.msra.mxu0 0.0
    %56 = vmatprep.subr.mxu0 0.0
    %57 = vmatpush1.msra.mxu0 0.0
    %58 = vmatprep.subr.mxu0 0.0
    %59 = vmatpush1.msra.mxu0 0.0
    %60 = vmatprep.subr.mxu0 0.0
    %61 = vmatpush1.msra.mxu0 0.0
    %62 = vmatprep.subr.mxu0 0.0
    %63 = vmatpush1.msra.mxu0 0.0
    %64 = vmatprep.subr.mxu0 0.0
    %65 = vmatpush1.msra.mxu0 0.0
    %66 = vmatprep.subr.mxu0 0.0
    %67 = vmatpush1.msra.mxu0 0.0
    %68 = vmatprep.subr.mxu0 0.0
    %69 = vmatpush1.msra.mxu0 0.0
    %70 = vmatprep.subr.mxu0 0.0
    %71 = vmatpush1.msra.mxu0 0.0
    %72 = vmatprep.subr.mxu0 0.0
    %73 = vmatpush1.msra.mxu0 0.0
    %74 = vmatprep.subr.mxu0 0.0
    %75 = vmatpush1.msra.mxu0 0.0
    %76 = vmatprep.subr.mxu0 0.0
    %77 = vmatpush1.msra.mxu0 0.0
    %78 = vmatprep.subr.mxu0 0.0
    %79 = vmatpush1.msra.mxu0 0.0
    %80 = vmatprep.subr.mxu0 0.0
    %81 = vmatpush1.msra.mxu0 0.0
    %82 = vmatprep.subr.mxu0 0.0
    %83 = vmatpush1.msra.mxu0 0.0
    %84 = vmatprep.subr.mxu0 0.0
    %85 = vmatpush1.msra.mxu0 0.0
    %86 = vmatprep.subr.mxu0 0.0
    %87 = vmatpush1.msra.mxu0 0.0
    %88 = vmatprep.subr.mxu0 0.0
    %89 = vmatpush1.msra.mxu0 0.0
    %90 = vmatprep.subr.mxu0 0.0
    %91 = vmatpush1.msra.mxu0 0.0
    %92 = vmatprep.mubr.f32.mxu0 0.0
    %93 = vmatmul.mubr.f32.gmra.mrb[0].mxu0 %v22
    %v94 = vpop.f32.mrb[0].mxu0
    %v95 = vadd.f32 0.0, %v94
    %v96 = vpop.f32.mrb[0].mxu0
    %97 = vdwg.mxu0
    %v98 = vld [vmem:[%s2] sm:$0x1]
    %v100 = vlaneseq
    %v101 = vshrl.u32 %v100, 7
    %v102 = vsub.s32 0, %v101
    %v103 = vrot.slane %v98, %v102
    %v105 = vmul.f32 %v95, %v103
    %v106 = vld [vmem:[%s3] sm:$0x1]
    %v108 = vlaneseq
    %v109 = vshrl.u32 %v108, 7
    %v110 = vsub.s32 0, %v109
    %v111 = vrot.slane %v106, %v110
    %v113 = vadd.f32 %v105, %v111
    %v114 = vand.u32 2147483647, %v113
    %vm115 = vcmp.le.f32.partialorder %v114, 0.7853982
    %vm116 = vcmp.lt.s32.totalorder %v113, 0
    %v117 = vand.u32 %v113, 2139095040
    %v118 = vshrl.u32 %v117, 23
    %v119 = vsub.s32 %v118, 127
    %v120 = vand.u32 2147483647, %v113
    %v121 = vand.u32 %v120, 8388607
    %v122 = vor.u32 %v121, 8388608
    %v123 = vsub.s32 0, %v122
    %v124 = vadd.s32 %v119, 1
    %vm125 = vcmp.gt.s32.totalorder %v124, 0
    %v126 = vsel %vm125, %v124, 0
    %v127 = vshrl.u32 %v126, 5
    %v128 = vand.u32 %v126, 31
    %v129 = vsub.s32 32, %v128
    %v130 = vshrl.u32 683565275, %v129
    %v131 = vshll.u32 683565275, %v128
    %v132 = vshrl.u32 2475754826, %v129
    %v133 = vor.u32 %v131, %v132
    %v134 = vshll.u32 2475754826, %v128
    %v135 = vshrl.u32 2131351028, %v129
    %v136 = vor.u32 %v134, %v135
    %v137 = vshll.u32 2131351028, %v128
    %v138 = vshrl.u32 2102212464, %v129
    %v139 = vor.u32 %v137, %v138
    %v140 = vshll.u32 2102212464, %v128
    %v141 = vshrl.u32 920167782, %v129
    %v142 = vor.u32 %v140, %v141
    %v143 = vshll.u32 920167782, %v128
    %v144 = vshrl.u32 1326507024, %v129
    %v145 = vor.u32 %v143, %v144
    %vm146 = vcmp.lt.s32.totalorder %v127, 1
    %vm147 = vcmp.lt.s32.totalorder %v127, 2
    %vm148 = vcmp.lt.s32.totalorder %v127, 3
    %vm149 = vcmp.lt.s32.totalorder %v127, 4
    %v150 = vsel %vm146, %v130, %v133
    %v151 = vsel %vm149, %v139, 2102212464
    %v152 = vsel %vm148, %v136, %v151
    %v153 = vsel %vm147, %v150, %v152
    %v154 = vsel %vm146, %v133, %v136
    %v155 = vsel %vm149, %v142, 920167782
    %v156 = vsel %vm148, %v139, %v155
    %v157 = vsel %vm147, %v154, %v156
    %v158 = vsel %vm146, %v136, %v139
    %v159 = vsel %vm149, %v145, 1326507024
    %v160 = vsel %vm148, %v142, %v159
    %v161 = vsel %vm147, %v158, %v160
    %v162 = vshll.u32 %v122, 8
    %v163 = vmul.u32.u64.compose %v162, %v161
    %v164 = vextract.low.u32 %v163
    %v165 = vextract.high.u32 %v163
    %v166 = vmul.u32.u64.compose %v162, %v157
    %v167 = vextract.low.u32 %v166
    %v168 = vextract.high.u32 %v166
    %v169 = vmul.u32 %v162, %v153
    %v170 = vadd.s32 %v165, %v167
    %vm171 = vc.u32 %v165, %v167
    %v172 = vadd.s32 %v168, 1
    %v173 = vsel %vm171, %v172, %v168
    %v174 = vadd.s32 %v169, %v173
    %v175 = vadd.s32 %v174, 536870912
    %v176 = vshrl.u32 %v175, 30
    %v177 = vshll.u32 %v176, 30
    %v178 = vsub.s32 %v174, %v177
    %vm179 = vcmp.lt.s32.totalorder %v178, 0
    %v180 = vsub.s32 0, %v178
    %v181 = vsel %vm179, %v180, %v178
    %v182 = vclz %v181
    %v183 = vsub.s32 %v182, 2
    %vm184 = vcmp.gt.s32.totalorder 0, %v183
    %v185 = vsel %vm184, 0, %v183
    %v186 = vsub.s32 32, %v185
    %v187 = vshll.u32 %v178, %v185
    %v188 = vshrl.u32 %v170, %v186
    %v189 = vor.u32 %v187, %v188
    %v190 = vsub.s32 4294967266, %v185
    %v191 = vadd.s32 %v190, 127
    %v192 = vshll.u32 %v191, 23
    %v193 = vor.u32 4788187, %v192
    %v194 = vand.u32 2147483647, %v193
    %v196 = vcvt.s32.f32 %v189
    %v197 = vmul.f32 %v196, %v194
    %v198 = vxor.u32 %v197, 2147483648
    %v199 = vsel %vm116, %v198, %v197
    %v200 = vsub.s32 4, %v176
    %v201 = vsel %vm116, %v200, %v176
    %v202 = vsel %vm115, %v113, %v199
    %v203 = vsel %vm115, 0, %v201
    %v204 = vcosq.f32.pop %v202
    %v205 = vsinq.f32.pop %v202
    %vm206 = vweird.f32 %v113
    %v207 = vadd.s32 %v203, 3
    %v208 = vand.u32 %v207, 3
    %vm209 = vcmp.lt.s32.totalorder %v208, 2
    %vm210 = vcmp.eq.s32.totalorder %v208, 0
    %v211 = vxor.u32 %v205, 2147483648
    %v212 = vsel %vm210, %v204, %v211
    %vm213 = vcmp.eq.s32.totalorder %v208, 2
    %v214 = vxor.u32 %v204, 2147483648
    %v215 = vsel %vm213, %v214, %v205
    %v216 = vsel %vm209, %v212, %v215
    %v217 = vsel %vm206, nan, %v216
    %218 = vst [vmem:[#allocation2] sm:$0xff] %v217
    // Predicated region
    $region18: #{tpu_custom_call.1} parent=1 // pred_check
      _
    $region19: #{tpu_custom_call.1} parent=1 // pred_check_branch
      %220 = sbr.rel (0) target = $region21
    $region20: #{tpu_custom_call.1} parent=1 // pred_region
      %s222 = ssub.s32 128, 128
      %223 = vsyncadd [#allocation3], %s222
      %s225 = sshll.u32 [#allocation2], 4
      %s226 = int_to_ptr.vmem [resolvable:$true] %s225
      %228 = dma.vmem_to_hbm [thread:$0]  %s226, 128, %s4, [#allocation3]
    $region21: #{tpu_custom_call.1} parent=1 // pred_fallthru
      _
    // Predicated region
    $region22: #{tpu_custom_call.1} parent=1 // pred_check
      _
    $region23: #{tpu_custom_call.1} parent=1 // pred_check_branch
      %230 = sbr.rel (0) target = $region25
    $region24: #{tpu_custom_call.1} parent=1 // pred_region
      %231 = dma.done [#allocation3], 128
    $region25: #{tpu_custom_call.1} parent=1 // pred_fallthru
      _
    %232 = vsyncpa [#allocation3], 1

</llo_original>
